<compile_context>
chip_gen: v6e
topology: v6e:2x2x1
jax: 0.10.0
libtpu: 0.0.40
codegen_flags: <defaults>
</compile_context>

<pallas_src>
import functools

import jax
import jax.numpy as jnp
from jax import lax
from jax.experimental import pallas as pl
from jax.experimental.pallas import tpu as pltpu


# ---------------------------------------------------------------------------
# Kernel
# ---------------------------------------------------------------------------
def _cross_fusion_kernel(q_ref, k_ref, v_ref, o_ref, *, scale, num_heads,
                         head_dim, dv_head, dv_pad, scale_on_q, mxu_dtype):
    # q_ref: (gb, N, H*head_dim)   k_ref: (gb, NK, H*head_dim)
    # v_ref: (gb, NK, H*dv_head)   o_ref: (gb, N, H*dv_head)
    def head_slice(ref, h, width):
        if num_heads == 1:
            return ref[...]
        return ref[:, :, h * width:(h + 1) * width]

    outs = []
    for h in range(num_heads):                       # static (unrolled) loop
        q = head_slice(q_ref, h, head_dim)
        k = head_slice(k_ref, h, head_dim)
        v = head_slice(v_ref, h, dv_head)

        if mxu_dtype is not None:
            q = q.astype(mxu_dtype)
            k = k.astype(mxu_dtype)

        # Apply softmax scale on the cheaper operand (q touches gb*N*hd elems,
        # the scores touch gb*N*NK); skip entirely when scale == 1.
        if scale != 1.0 and scale_on_q:
            q = q * jnp.asarray(scale, dtype=q.dtype)

        # scores = q @ k^T  — batched NT contraction on the MXU, f32 accumulate.
        s = lax.dot_general(
            q, k,
            dimension_numbers=(((2,), (2,)), ((0,), (0,))),
            preferred_element_type=jnp.float32)
        if scale != 1.0 and not scale_on_q:
            s = s * scale

        # Numerically stable softmax over the key axis (matches torch.softmax).
        s = s - jnp.max(s, axis=-1, keepdims=True)
        p = jnp.exp(s)
        l = jnp.sum(p, axis=-1, keepdims=True)
        inv = pl.reciprocal(l, approx=True)          # EUP slot (otherwise idle)
        inv = inv * (2.0 - l * inv)                  # one Newton step -> f32 accurate
        p = p * inv
        # attn_drop has p=0.0 -> identity (eval semantics)

        # PV matmul.  Zero-pad v to a lane-aligned width in REGISTERS (no VMEM
        # scratch round trip); the padded result columns are sliced off in
        # registers before the store.
        pv_dtype = mxu_dtype if mxu_dtype is not None else v.dtype
        v_mm = v.astype(pv_dtype)
        if dv_pad > dv_head:
            gb, nk, _ = v_mm.shape
            v_mm = jnp.concatenate(
                [v_mm, jnp.zeros((gb, nk, dv_pad - dv_head), dtype=pv_dtype)],
                axis=-1)
        o = lax.dot_general(
            p.astype(pv_dtype), v_mm,
            dimension_numbers=(((2,), (1,)), ((0,), (0,))),
            preferred_element_type=jnp.float32)
        if dv_pad > dv_head:
            o = o[:, :, :dv_head]
        outs.append(o)

    o_full = outs[0] if num_heads == 1 else jnp.concatenate(outs, axis=-1)
    o_ref[...] = o_full.astype(o_ref.dtype)          # single dv-wide store


# ---------------------------------------------------------------------------
# Chip-aware sizing helpers
# ---------------------------------------------------------------------------
def _tpu_topology():
    """Best-effort (num_tensorcores_per_chip, vmem_budget_bytes); safe fallbacks."""
    cores, vmem_budget = 1, 32 << 20
    try:
        kind = jax.devices()[0].device_kind.lower()
    except Exception:
        kind = ""
    if "v7" in kind:
        cores, vmem_budget = 2, 24 << 20        # 64 MiB physical VMEM per TC
    elif "v4" in kind or "v5p" in kind:
        cores, vmem_budget = 2, 48 << 20        # megacore
    elif "v5" in kind or "v6" in kind:
        cores, vmem_budget = 1, 48 << 20        # 128 MiB physical VMEM
    try:
        cap = getattr(pltpu.get_tpu_info(), "vmem_capacity_bytes", None)
        if isinstance(cap, int) and cap > 0:
            vmem_budget = min(max(vmem_budget, cap // 4), cap // 2)
    except Exception:
        pass
    return cores, vmem_budget


def _pick_batch_block(B, per_b_block_bytes, per_b_reg_bytes, cores, vmem_budget):
    """Largest divisor of B that fits the VMEM / vreg budgets and, when possible,
    yields at least `cores` grid steps (so every TensorCore gets work)."""
    gb_vreg = max(1, (128 * 1024) // max(1, per_b_reg_bytes))
    gb_vmem = max(1, (vmem_budget // 2) // max(1, per_b_block_bytes + per_b_reg_bytes))
    gb_cap = max(1, min(B, gb_vreg, gb_vmem))
    divisors = [d for d in range(1, B + 1) if B % d == 0]
    min_steps = cores if (cores > 1 and B >= cores) else 1
    valid = [d for d in divisors if d <= gb_cap and (B // d) >= min_steps]
    if not valid:
        # TODO(synk): for odd B on multi-TC chips, pad/mask a batch element
        # instead of collapsing to fewer steps than cores.
        valid = [d for d in divisors if d <= gb_cap] or [1]
    gb = max(valid)
    return gb, B // gb


# ---------------------------------------------------------------------------
# Wrapper
# ---------------------------------------------------------------------------
def cross_fusion(q, k, v, *, out_dim, num_heads=1, qk_scale=1, mxu_dtype=None):
    """Pallas implementation of CrossFusion.forward (q_map/k_map/x_map = Identity)."""
    B, N, dim = q.shape
    NK = k.shape[1]
    C = out_dim
    head_dim = C // num_heads
    if dim != num_heads * head_dim:
        raise ValueError("q last dim must equal out_dim (as in the PyTorch view)")
    # Matches PyTorch exactly: `qk_scale or head_dim ** -0.5` (falsy -> default).
    scale = qk_scale or head_dim ** (-0.5)
    Dv = v.shape[2]
    dv_head = Dv // num_heads

    # Lane-aligned width used for the PV matmul (register-level zero pad only).
    dv_pad = dv_head if dv_head % 128 == 0 else ((dv_head + 127) // 128) * 128
    # Scale the smaller operand.
    scale_on_q = NK > head_dim

    cores, vmem_budget = _tpu_topology()
    itemsize = jnp.dtype(q.dtype).itemsize
    # Double-buffered q/k/v/out blocks per batch element ...
    per_b_block_bytes = 2 * (N * dim + NK * dim + NK * Dv + N * Dv) * itemsize
    # ... plus the per-head in-register working set (scores, probs, padded v/o).
    per_b_reg_bytes = (2 * N * NK + (NK + N) * dv_pad) * 4
    gb, G = _pick_batch_block(B, per_b_block_bytes, per_b_reg_bytes, cores,
                              vmem_budget)

    kernel = functools.partial(
        _cross_fusion_kernel, scale=float(scale), num_heads=num_heads,
        head_dim=head_dim, dv_head=dv_head, dv_pad=dv_pad,
        scale_on_q=scale_on_q, mxu_dtype=mxu_dtype)

    out = pl.pallas_call(
        kernel,
        out_shape=jax.ShapeDtypeStruct((B, N, Dv), q.dtype),
        grid_spec=pltpu.PrefetchScalarGridSpec(
            num_scalar_prefetch=0,
            grid=(G,),
            in_specs=[
                pl.BlockSpec((gb, N, dim), lambda g: (g, 0, 0)),
                pl.BlockSpec((gb, NK, dim), lambda g: (g, 0, 0)),
                pl.BlockSpec((gb, NK, Dv), lambda g: (g, 0, 0)),
            ],
            out_specs=pl.BlockSpec((gb, N, Dv), lambda g: (g, 0, 0)),
        ),
        compiler_params=pltpu.CompilerParams(
            dimension_semantics=("parallel",),
            vmem_limit_bytes=int(vmem_budget)),
    )(q, k, v)
    # Heads are already laid out contiguously along the last dim (same order as
    # the PyTorch transpose(1,2).reshape(B, N, 3)); no further reshape needed.
    return out


# ---------------------------------------------------------------------------
# Pure-JAX reference (mirrors the PyTorch module)
# ---------------------------------------------------------------------------
def _reference(q, k, v, *, out_dim, num_heads=1, qk_scale=1):
    B, N, _ = q.shape
    NK = k.shape[1]
    head_dim = out_dim // num_heads
    scale = qk_scale or head_dim ** (-0.5)
    qh = q.reshape(B, N, num_heads, head_dim).transpose(0, 2, 1, 3)
    kh = k.reshape(B, NK, num_heads, head_dim).transpose(0, 2, 1, 3)
    vh = v.reshape(B, NK, num_heads, -1).transpose(0, 2, 1, 3)
    attn = jnp.einsum("bhnd,bhkd->bhnk", qh, kh) * scale
    attn = jax.nn.softmax(attn, axis=-1)
    x = jnp.einsum("bhnk,bhkd->bhnd", attn, vh)
    return x.transpose(0, 2, 1, 3).reshape(B, N, -1)


if __name__ == "__main__":
    # Module config (no learnable params: Identity maps only).
    dim = 32
    out_dim = 32
    num_heads = 1
    qk_scale = 1

    # forward(): q (B, N, dim), k (B, NK, dim), v (B, NK, 3)
    B, N, NK = 2, 8, 8
    key = jax.random.PRNGKey(0)
    kq, kk, kv = jax.random.split(key, 3)
    q = jax.random.normal(kq, (B, N, dim), dtype=jnp.float32)
    k = jax.random.normal(kk, (B, NK, dim), dtype=jnp.float32)
    v = jax.random.normal(kv, (B, NK, 3 * num_heads), dtype=jnp.float32)

    out = cross_fusion(q, k, v, out_dim=out_dim, num_heads=num_heads,
                       qk_scale=qk_scale)
    out = jax.block_until_ready(out)

    ref = _reference(q, k, v, out_dim=out_dim, num_heads=num_heads,
                     qk_scale=qk_scale)
    assert out.shape == (B, N, 3), out.shape
    assert jnp.allclose(out, ref, atol=2e-5, rtol=2e-5), "mismatch vs reference"

    print("KERNEL_OK")
</pallas_src>

<mosaic_0001>
module attributes {stable_mosaic.version = 11 : i64} {
  func.func @_cross_fusion_kernel(%arg0: i32, %arg1: memref<2x8x32xf32, #tpu.memory_space<vmem>>, %arg2: memref<2x8x32xf32, #tpu.memory_space<vmem>>, %arg3: memref<2x8x3xf32, #tpu.memory_space<vmem>>, %arg4: memref<2x8x3xf32, #tpu.memory_space<vmem>>) attributes {dimension_semantics = [#tpu.dimension_semantics<parallel>], iteration_bounds = array<i64: 1>, scalar_prefetch = 0 : i64, scratch_operands = 0 : i64, tpu.core_type = #tpu.core_type<tc>, window_params = [{transform_indices = @transform_0, window_bounds = array<i64: 2, 8, 32>}, {transform_indices = @transform_1, window_bounds = array<i64: 2, 8, 32>}, {transform_indices = @transform_2, window_bounds = array<i64: 2, 8, 3>}, {transform_indices = @transform_3, window_bounds = array<i64: 2, 8, 3>}]} {
    %c0 = arith.constant 0 : index
    %c0_0 = arith.constant 0 : index
    %c0_1 = arith.constant 0 : index
    %0 = vector.load %arg1[%c0, %c0_0, %c0_1] : memref<2x8x32xf32, #tpu.memory_space<vmem>>, vector<2x8x32xf32>
    %c0_2 = arith.constant 0 : index
    %c0_3 = arith.constant 0 : index
    %c0_4 = arith.constant 0 : index
    %1 = vector.load %arg2[%c0_2, %c0_3, %c0_4] : memref<2x8x32xf32, #tpu.memory_space<vmem>>, vector<2x8x32xf32>
    %c0_5 = arith.constant 0 : index
    %c0_6 = arith.constant 0 : index
    %c0_7 = arith.constant 0 : index
    %2 = vector.load %arg3[%c0_5, %c0_6, %c0_7] : memref<2x8x3xf32, #tpu.memory_space<vmem>>, vector<2x8x3xf32>
    %cst = arith.constant dense<0.000000e+00> : vector<2x8x8xf32>
    %3 = tpu.matmul %0, %1, %cst {dimension_numbers = #tpu.dot_dimension_numbers<[2], [2], [1], [1], [0, 0, 0, 1, 1, 1], [0], [0]>} : vector<2x8x32xf32>, vector<2x8x32xf32>, vector<2x8x8xf32> -> vector<2x8x8xf32>
    %cst_8 = arith.constant dense<0xFF800000> : vector<2x8xf32>
    %4 = vector.multi_reduction <maximumf>, %3, %cst_8 [2] : vector<2x8x8xf32> to vector<2x8xf32>
    %5 = vector.shape_cast %4 : vector<2x8xf32> to vector<2x8x1xf32>
    %6 = vector.broadcast %5 : vector<2x8x1xf32> to vector<2x8x8xf32>
    %7 = arith.subf %3, %6 : vector<2x8x8xf32>
    %8 = math.exp %7 : vector<2x8x8xf32>
    %cst_9 = arith.constant dense<0.000000e+00> : vector<2x8xf32>
    %9 = vector.multi_reduction <add>, %8, %cst_9 [2] : vector<2x8x8xf32> to vector<2x8xf32>
    %10 = vector.shape_cast %9 : vector<2x8xf32> to vector<2x8x1xf32>
    %11 = tpu.reciprocal %10 {approx = true} : vector<2x8x1xf32> -> vector<2x8x1xf32>
    %12 = arith.mulf %10, %11 : vector<2x8x1xf32>
    %cst_10 = arith.constant 2.000000e+00 : f32
    %13 = vector.broadcast %cst_10 : f32 to vector<2x8x1xf32>
    %14 = arith.subf %13, %12 : vector<2x8x1xf32>
    %15 = arith.mulf %11, %14 : vector<2x8x1xf32>
    %16 = vector.broadcast %15 : vector<2x8x1xf32> to vector<2x8x8xf32>
    %17 = arith.mulf %8, %16 : vector<2x8x8xf32>
    %cst_11 = arith.constant 0.000000e+00 : f32
    %18 = vector.broadcast %cst_11 : f32 to vector<2x8x125xf32>
    %19 = tpu.concatenate %2, %18 in 2 : vector<2x8x3xf32>, vector<2x8x125xf32> -> vector<2x8x128xf32>
    %cst_12 = arith.constant dense<0.000000e+00> : vector<2x8x128xf32>
    %20 = tpu.matmul %17, %19, %cst_12 {dimension_numbers = #tpu.dot_dimension_numbers<[2], [1], [1], [2], [0, 0, 0, 1, 1, 2], [0], [0]>} : vector<2x8x8xf32>, vector<2x8x128xf32>, vector<2x8x128xf32> -> vector<2x8x128xf32>
    %21 = vector.extract_strided_slice %20 {offsets = [0, 0, 0], sizes = [2, 8, 3], strides = [1, 1, 1]} : vector<2x8x128xf32> to vector<2x8x3xf32>
    %c0_13 = arith.constant 0 : index
    %c0_14 = arith.constant 0 : index
    %c0_15 = arith.constant 0 : index
    %22 = vector.load %arg4[%c0_13, %c0_14, %c0_15] : memref<2x8x3xf32, #tpu.memory_space<vmem>>, vector<2x8x3xf32>
    tpu.vector_store %arg4[%c0_13, %c0_14, %c0_15], %21 {strides = array<i32>} : memref<2x8x3xf32, #tpu.memory_space<vmem>>, vector<2x8x3xf32>,
    return
  }
  func.func @transform_0(%arg0: i32) -> (i32, i32, i32) {
    %c0_i32 = arith.constant 0 : i32
    %c0_i32_0 = arith.constant 0 : i32
    %c0_i32_1 = arith.constant 0 : i32
    return %arg0, %c0_i32, %c0_i32_0 : i32, i32, i32
  }
  func.func @transform_1(%arg0: i32) -> (i32, i32, i32) {
    %c0_i32 = arith.constant 0 : i32
    %c0_i32_0 = arith.constant 0 : i32
    %c0_i32_1 = arith.constant 0 : i32
    return %arg0, %c0_i32, %c0_i32_0 : i32, i32, i32
  }
  func.func @transform_2(%arg0: i32) -> (i32, i32, i32) {
    %c0_i32 = arith.constant 0 : i32
    %c0_i32_0 = arith.constant 0 : i32
    %c0_i32_1 = arith.constant 0 : i32
    return %arg0, %c0_i32, %c0_i32_0 : i32, i32, i32
  }
  func.func @transform_3(%arg0: i32) -> (i32, i32, i32) {
    %c0_i32 = arith.constant 0 : i32
    %c0_i32_0 = arith.constant 0 : i32
    %c0_i32_1 = arith.constant 0 : i32
    return %arg0, %c0_i32, %c0_i32_0 : i32, i32, i32
  }
}

</mosaic_0001>

<llo_original>
// kernel: tpu_custom_call.1
$region0: #{tpu_custom_call.1}
  #allocation0 [shape = 'u32[]', space=smem, size = 0x4, offset = 0x4, fixed_abs, tag = 'smem constant byte address 0x4 - core index']
  #allocation1 [shape = 'u32[144,128]{1,0:T(1,128)}', space=vmem, size = 0x12000, scoped, tag = 'internal scratch']
  %s0 = inlined_call_operand.vmem [shape: f32[2,8,32], index: 0, kind: input, shape index: {}]
  %s1 = inlined_call_operand.hbm [shape: f32[2,8,32], index: 1, kind: input, shape index: {}]
  %s2 = inlined_call_operand.vmem [shape: f32[2,8,3], index: 2, kind: input, shape index: {}]
  %s3 = inlined_call_operand.vmem [shape: f32[2,8,3], index: 3, kind: output, shape index: {}]
  %s4 = sld [smem:[#allocation0]]
  $region26: #{tpu_custom_call.1} parent=0
    _
  %s6 = ssub.s32 1, %s4
  %s7 = scalar_select 0, %s6, %s4
  $region1: #{tpu_custom_call.1} parent=0
    #allocation2 [shape = 'u8[8192]{0}', space=vmem, size = 0x2000, scoped, tag = 'input window, operand 1, single buffered']
    #allocation3 [shape = 's32[1]{0}', space=sflag, size = 0x4, scoped, tag = 'scoped memory for tpu_custom_call.1']
    %8 = vsyncpa [#allocation3], 0
    // Predicated region
    $region2: #{tpu_custom_call.1} parent=1 // pred_check
      _
    $region3: #{tpu_custom_call.1} parent=1 // pred_check_branch
      %10 = sbr.rel (0) target = $region5
    $region4: #{tpu_custom_call.1} parent=1 // pred_region
      _
    $region5: #{tpu_custom_call.1} parent=1 // pred_fallthru
      _
    // Predicated region
    $region6: #{tpu_custom_call.1} parent=1 // pred_check
      _
    $region7: #{tpu_custom_call.1} parent=1 // pred_check_branch
      %12 = sbr.rel (0) target = $region9
    $region8: #{tpu_custom_call.1} parent=1 // pred_region
      %s14 = ssub.s32 256, 256
      %15 = vsyncadd [#allocation3], %s14
      %s16 = sshll.u32 [#allocation2], 4
      %s17 = int_to_ptr.vmem [resolvable:$true] %s16
      %22 = dma.hbm_to_vmem [thread:$0]  %s1, 256, %s17, [#allocation3], 128, 128, 8
    $region9: #{tpu_custom_call.1} parent=1 // pred_fallthru
      _
    // Predicated region
    $region10: #{tpu_custom_call.1} parent=1 // pred_check
      _
    $region11: #{tpu_custom_call.1} parent=1 // pred_check_branch
      %24 = sbr.rel (0) target = $region13
    $region12: #{tpu_custom_call.1} parent=1 // pred_region
      _
    $region13: #{tpu_custom_call.1} parent=1 // pred_fallthru
      _
    // Predicated region
    $region14: #{tpu_custom_call.1} parent=1 // pred_check
      _
    $region15: #{tpu_custom_call.1} parent=1 // pred_check_branch
      %26 = sbr.rel (0) target = $region17
    $region16: #{tpu_custom_call.1} parent=1 // pred_region
      %27 = dma.done [#allocation3], 256
    $region17: #{tpu_custom_call.1} parent=1 // pred_fallthru
      _
    %v28 = vld [vmem:[%s0] sm:$0xff]
    %v29 = vld [vmem:[%s0 + $0x8] sm:$0xff]
    %v30 = vld [vmem:[#allocation2] sm:$0xff]
    %v31 = vld [vmem:[#allocation2 + $0x8] sm:$0xff]
    %v32 = vld [vmem:[%s2] sm:$0xff]
    %v33 = vld [vmem:[%s2 + $0x8] sm:$0xff]
    %vm34 = vcmask 261120
    %v36 = vsel %vm34, %v28, 0
    %v39 = vsel %vm34, %v30, 0
    %41 = vmatprep.subr.mxu0 0.0
    %42 = vmatpush1.xpose.msra.mxu0 0.0
    %43 = vmatprep.subr.mxu0 0.0
    %44 = vmatpush1.xpose.msra.mxu0 0.0
    %45 = vmatprep.subr.mxu0 0.0
    %46 = vmatpush1.xpose.msra.mxu0 0.0
    %47 = vmatprep.subr.mxu0 0.0
    %48 = vmatpush1.xpose.msra.mxu0 0.0
    %49 = vmatprep.subr.mxu0 0.0
    %50 = vmatpush1.xpose.msra.mxu0 0.0
    %51 = vmatprep.subr.mxu0 0.0
    %52 = vmatpush1.xpose.msra.mxu0 0.0
    %53 = vmatprep.subr.mxu0 0.0
    %54 = vmatpush1.xpose.msra.mxu0 0.0
    %55 = vmatprep.subr.mxu0 0.0
    %56 = vmatpush1.xpose.msra.mxu0 0.0
    %57 = vmatprep.subr.mxu0 0.0
    %58 = vmatpush1.xpose.msra.mxu0 0.0
    %59 = vmatprep.subr.mxu0 0.0
    %60 = vmatpush1.xpose.msra.mxu0 0.0
    %61 = vmatprep.subr.mxu0 0.0
    %62 = vmatpush1.xpose.msra.mxu0 0.0
    %63 = vmatprep.subr.mxu0 0.0
    %64 = vmatpush1.xpose.msra.mxu0 0.0
    %65 = vmatprep.subr.mxu0 0.0
    %66 = vmatpush1.xpose.msra.mxu0 0.0
    %67 = vmatprep.subr.mxu0 0.0
    %68 = vmatpush1.xpose.msra.mxu0 0.0
    %69 = vmatprep.subr.mxu0 0.0
    %70 = vmatpush1.xpose.msra.mxu0 0.0
    %71 = vmatprep.subr.mxu0 0.0
    %72 = vmatpush1.xpose.msra.mxu0 %v39
    %73 = vmatprep.subr.mxu0 0.0
    %74 = vmatpush2.xpose.msra.mxu0 0.0
    %75 = vmatprep.subr.mxu0 0.0
    %76 = vmatpush2.xpose.msra.mxu0 0.0
    %77 = vmatprep.subr.mxu0 0.0
    %78 = vmatpush2.xpose.msra.mxu0 0.0
    %79 = vmatprep.subr.mxu0 0.0
    %80 = vmatpush2.xpose.msra.mxu0 0.0
    %81 = vmatprep.subr.mxu0 0.0
    %82 = vmatpush2.xpose.msra.mxu0 0.0
    %83 = vmatprep.subr.mxu0 0.0
    %84 = vmatpush2.xpose.msra.mxu0 0.0
    %85 = vmatprep.subr.mxu0 0.0
    %86 = vmatpush2.xpose.msra.mxu0 0.0
    %87 = vmatprep.subr.mxu0 0.0
    %88 = vmatpush2.xpose.msra.mxu0 0.0
    %89 = vmatprep.subr.mxu0 0.0
    %90 = vmatpush2.xpose.msra.mxu0 0.0
    %91 = vmatprep.subr.mxu0 0.0
    %92 = vmatpush2.xpose.msra.mxu0 0.0
    %93 = vmatprep.subr.mxu0 0.0
    %94 = vmatpush2.xpose.msra.mxu0 0.0
    %95 = vmatprep.subr.mxu0 0.0
    %96 = vmatpush2.xpose.msra.mxu0 0.0
    %97 = vmatprep.subr.mxu0 0.0
    %98 = vmatpush2.xpose.msra.mxu0 0.0
    %99 = vmatprep.subr.mxu0 0.0
    %100 = vmatpush2.xpose.msra.mxu0 0.0
    %101 = vmatprep.subr.mxu0 0.0
    %102 = vmatpush2.xpose.msra.mxu0 0.0
    %103 = vmatprep.subr.mxu0 0.0
    %104 = vmatpush2.xpose.msra.mxu0 0.0
    %105 = vmatprep.mubr.f32.mxu0 0.0
    %106 = vmatmul.mubr.f32.gmra.mxu0 %v36
    %v107 = vpop.f32.mrf.mxu0
    %v108 = vadd.f32 0.0, %v107
    %v109 = vpop.f32.mrf.mxu0
    %110 = vdwg.mxu0
    %v112 = vsel %vm34, %v29, 0
    %v115 = vsel %vm34, %v31, 0
    %117 = vmatprep.subr.mxu0 0.0
    %118 = vmatpush1.xpose.msra.mxu0 0.0
    %119 = vmatprep.subr.mxu0 0.0
    %120 = vmatpush1.xpose.msra.mxu0 0.0
    %121 = vmatprep.subr.mxu0 0.0
    %122 = vmatpush1.xpose.msra.mxu0 0.0
    %123 = vmatprep.subr.mxu0 0.0
    %124 = vmatpush1.xpose.msra.mxu0 0.0
    %125 = vmatprep.subr.mxu0 0.0
    %126 = vmatpush1.xpose.msra.mxu0 0.0
    %127 = vmatprep.subr.mxu0 0.0
    %128 = vmatpush1.xpose.msra.mxu0 0.0
    %129 = vmatprep.subr.mxu0 0.0
    %130 = vmatpush1.xpose.msra.mxu0 0.0
    %131 = vmatprep.subr.mxu0 0.0
    %132 = vmatpush1.xpose.msra.mxu0 0.0
    %133 = vmatprep.subr.mxu0 0.0
    %134 = vmatpush1.xpose.msra.mxu0 0.0
    %135 = vmatprep.subr.mxu0 0.0
    %136 = vmatpush1.xpose.msra.mxu0 0.0
    %137 = vmatprep.subr.mxu0 0.0
    %138 = vmatpush1.xpose.msra.mxu0 0.0
    %139 = vmatprep.subr.mxu0 0.0
    %140 = vmatpush1.xpose.msra.mxu0 0.0
    %141 = vmatprep.subr.mxu0 0.0
    %142 = vmatpush1.xpose.msra.mxu0 0.0
    %143 = vmatprep.subr.mxu0 0.0
    %144 = vmatpush1.xpose.msra.mxu0 0.0
    %145 = vmatprep.subr.mxu0 0.0
    %146 = vmatpush1.xpose.msra.mxu0 0.0
    %147 = vmatprep.subr.mxu0 0.0
    %148 = vmatpush1.xpose.msra.mxu0 %v115
    %149 = vmatprep.subr.mxu0 0.0
    %150 = vmatpush2.xpose.msra.mxu0 0.0
    %151 = vmatprep.subr.mxu0 0.0
    %152 = vmatpush2.xpose.msra.mxu0 0.0
    %153 = vmatprep.subr.mxu0 0.0
    %154 = vmatpush2.xpose.msra.mxu0 0.0
    %155 = vmatprep.subr.mxu0 0.0
    %156 = vmatpush2.xpose.msra.mxu0 0.0
    %157 = vmatprep.subr.mxu0 0.0
    %158 = vmatpush2.xpose.msra.mxu0 0.0
    %159 = vmatprep.subr.mxu0 0.0
    %160 = vmatpush2.xpose.msra.mxu0 0.0
    %161 = vmatprep.subr.mxu0 0.0
    %162 = vmatpush2.xpose.msra.mxu0 0.0
    %163 = vmatprep.subr.mxu0 0.0
    %164 = vmatpush2.xpose.msra.mxu0 0.0
    %165 = vmatprep.subr.mxu0 0.0
    %166 = vmatpush2.xpose.msra.mxu0 0.0
    %167 = vmatprep.subr.mxu0 0.0
    %168 = vmatpush2.xpose.msra.mxu0 0.0
    %169 = vmatprep.subr.mxu0 0.0
    %170 = vmatpush2.xpose.msra.mxu0 0.0
    %171 = vmatprep.subr.mxu0 0.0
    %172 = vmatpush2.xpose.msra.mxu0 0.0
    %173 = vmatprep.subr.mxu0 0.0
    %174 = vmatpush2.xpose.msra.mxu0 0.0
    %175 = vmatprep.subr.mxu0 0.0
    %176 = vmatpush2.xpose.msra.mxu0 0.0
    %177 = vmatprep.subr.mxu0 0.0
    %178 = vmatpush2.xpose.msra.mxu0 0.0
    %179 = vmatprep.subr.mxu0 0.0
    %180 = vmatpush2.xpose.msra.mxu0 0.0
    %181 = vmatprep.mubr.f32.mxu0 0.0
    %182 = vmatmul.mubr.f32.gmra.mxu0 %v112
    %v183 = vpop.f32.mrf.mxu0
    %v184 = vadd.f32 0.0, %v183
    %v185 = vpop.f32.mrf.mxu0
    %186 = vdwg.mxu0
    %vm187 = vcmask 64512
    %v188 = vsel %vm187, %v108, -inf
    %189 = vmax.xlane.f32.xlu0 %v188
    %v190 = vpop.xlane.xlu0 %189
    %v191 = vsel %vm187, %v184, -inf
    %192 = vmax.xlane.f32.xlu0 %v191
    %v193 = vpop.xlane.xlu0 %192
    %v194 = vsub.f32 %v108, %v190
    %v195 = vsub.f32 %v184, %v193
    %v196 = vmul.f32 %v194, 1.442695
    %v197 = vpow.pop %v196
    %v198 = vmul.f32 %v195, 1.442695
    %v199 = vpow.pop %v198
    %v200 = vsel %vm187, %v197, 0.0
    %201 = vadd.xlane.f32.xlu0 %v200
    %v202 = vpop.xlane.xlu0 %201
    %v203 = vsel %vm187, %v199, 0.0
    %204 = vadd.xlane.f32.xlu0 %v203
    %v205 = vpop.xlane.xlu0 %204
    %v206 = vrcp.pop %v202
    %v207 = vrcp.pop %v205
    %v208 = vmul.f32 %v202, %v206
    %v209 = vmul.f32 %v205, %v207
    %v210 = vsub.f32 2.0, %v208
    %v211 = vsub.f32 2.0, %v209
    %v212 = vmul.f32 %v206, %v210
    %v213 = vmul.f32 %v207, %v211
    %v214 = vmul.f32 %v197, %v212
    %v215 = vmul.f32 %v199, %v213
    %vm216 = vcmask 23552
    %v217 = vsel %vm216, %v32, 0.0
    %v218 = vsel %vm216, %v33, 0.0
    %v220 = vsel %vm187, %v214, 0
    %222 = vmatprep.subr.mxu0 0.0
    %223 = vmatpush1.msra.mxu0 0.0
    %224 = vmatprep.subr.mxu0 0.0
    %225 = vmatpush1.msra.mxu0 0.0
    %226 = vmatprep.subr.mxu0 0.0
    %227 = vmatpush1.msra.mxu0 0.0
    %228 = vmatprep.subr.mxu0 0.0
    %229 = vmatpush1.msra.mxu0 0.0
    %230 = vmatprep.subr.mxu0 0.0
    %231 = vmatpush1.msra.mxu0 0.0
    %232 = vmatprep.subr.mxu0 0.0
    %233 = vmatpush1.msra.mxu0 0.0
    %234 = vmatprep.subr.mxu0 0.0
    %235 = vmatpush1.msra.mxu0 0.0
    %236 = vmatprep.subr.mxu0 0.0
    %237 = vmatpush1.msra.mxu0 0.0
    %238 = vmatprep.subr.mxu0 0.0
    %239 = vmatpush1.msra.mxu0 0.0
    %240 = vmatprep.subr.mxu0 0.0
    %241 = vmatpush1.msra.mxu0 0.0
    %242 = vmatprep.subr.mxu0 0.0
    %243 = vmatpush1.msra.mxu0 0.0
    %244 = vmatprep.subr.mxu0 0.0
    %245 = vmatpush1.msra.mxu0 0.0
    %246 = vmatprep.subr.mxu0 0.0
    %247 = vmatpush1.msra.mxu0 0.0
    %248 = vmatprep.subr.mxu0 0.0
    %249 = vmatpush1.msra.mxu0 0.0
    %250 = vmatprep.subr.mxu0 0.0
    %251 = vmatpush1.msra.mxu0 0.0
    %252 = vmatprep.subr.mxu0 0.0
    %253 = vmatpush1.msra.mxu0 %v217
    %254 = vmatprep.subr.mxu0 0.0
    %255 = vmatpush2.msra.mxu0 0.0
    %256 = vmatprep.subr.mxu0 0.0
    %257 = vmatpush2.msra.mxu0 0.0
    %258 = vmatprep.subr.mxu0 0.0
    %259 = vmatpush2.msra.mxu0 0.0
    %260 = vmatprep.subr.mxu0 0.0
    %261 = vmatpush2.msra.mxu0 0.0
    %262 = vmatprep.subr.mxu0 0.0
    %263 = vmatpush2.msra.mxu0 0.0
    %264 = vmatprep.subr.mxu0 0.0
    %265 = vmatpush2.msra.mxu0 0.0
    %266 = vmatprep.subr.mxu0 0.0
    %267 = vmatpush2.msra.mxu0 0.0
    %268 = vmatprep.subr.mxu0 0.0
    %269 = vmatpush2.msra.mxu0 0.0
    %270 = vmatprep.subr.mxu0 0.0
    %271 = vmatpush2.msra.mxu0 0.0
    %272 = vmatprep.subr.mxu0 0.0
    %273 = vmatpush2.msra.mxu0 0.0
    %274 = vmatprep.subr.mxu0 0.0
    %275 = vmatpush2.msra.mxu0 0.0
    %276 = vmatprep.subr.mxu0 0.0
    %277 = vmatpush2.msra.mxu0 0.0
    %278 = vmatprep.subr.mxu0 0.0
    %279 = vmatpush2.msra.mxu0 0.0
    %280 = vmatprep.subr.mxu0 0.0
    %281 = vmatpush2.msra.mxu0 0.0
    %282 = vmatprep.subr.mxu0 0.0
    %283 = vmatpush2.msra.mxu0 0.0
    %284 = vmatprep.subr.mxu0 0.0
    %285 = vmatpush2.msra.mxu0 0.0
    %286 = vmatprep.mubr.f32.mxu0 0.0
    %287 = vmatmul.mubr.f32.gmra.mxu0 %v220
    %v288 = vpop.f32.mrf.mxu0
    %v289 = vadd.f32 0.0, %v288
    %v290 = vpop.f32.mrf.mxu0
    %291 = vdwg.mxu0
    %v293 = vsel %vm187, %v215, 0
    %295 = vmatprep.subr.mxu0 0.0
    %296 = vmatpush1.msra.mxu0 0.0
    %297 = vmatprep.subr.mxu0 0.0
    %298 = vmatpush1.msra.mxu0 0.0
    %299 = vmatprep.subr.mxu0 0.0
    %300 = vmatpush1.msra.mxu0 0.0
    %301 = vmatprep.subr.mxu0 0.0
    %302 = vmatpush1.msra.mxu0 0.0
    %303 = vmatprep.subr.mxu0 0.0
    %304 = vmatpush1.msra.mxu0 0.0
    %305 = vmatprep.subr.mxu0 0.0
    %306 = vmatpush1.msra.mxu0 0.0
    %307 = vmatprep.subr.mxu0 0.0
    %308 = vmatpush1.msra.mxu0 0.0
    %309 = vmatprep.subr.mxu0 0.0
    %310 = vmatpush1.msra.mxu0 0.0
    %311 = vmatprep.subr.mxu0 0.0
    %312 = vmatpush1.msra.mxu0 0.0
    %313 = vmatprep.subr.mxu0 0.0
    %314 = vmatpush1.msra.mxu0 0.0
    %315 = vmatprep.subr.mxu0 0.0
    %316 = vmatpush1.msra.mxu0 0.0
    %317 = vmatprep.subr.mxu0 0.0
    %318 = vmatpush1.msra.mxu0 0.0
    %319 = vmatprep.subr.mxu0 0.0
    %320 = vmatpush1.msra.mxu0 0.0
    %321 = vmatprep.subr.mxu0 0.0
    %322 = vmatpush1.msra.mxu0 0.0
    %323 = vmatprep.subr.mxu0 0.0
    %324 = vmatpush1.msra.mxu0 0.0
    %325 = vmatprep.subr.mxu0 0.0
    %326 = vmatpush1.msra.mxu0 %v218
    %327 = vmatprep.subr.mxu0 0.0
    %328 = vmatpush2.msra.mxu0 0.0
    %329 = vmatprep.subr.mxu0 0.0
    %330 = vmatpush2.msra.mxu0 0.0
    %331 = vmatprep.subr.mxu0 0.0
    %332 = vmatpush2.msra.mxu0 0.0
    %333 = vmatprep.subr.mxu0 0.0
    %334 = vmatpush2.msra.mxu0 0.0
    %335 = vmatprep.subr.mxu0 0.0
    %336 = vmatpush2.msra.mxu0 0.0
    %337 = vmatprep.subr.mxu0 0.0
    %338 = vmatpush2.msra.mxu0 0.0
    %339 = vmatprep.subr.mxu0 0.0
    %340 = vmatpush2.msra.mxu0 0.0
    %341 = vmatprep.subr.mxu0 0.0
    %342 = vmatpush2.msra.mxu0 0.0
    %343 = vmatprep.subr.mxu0 0.0
    %344 = vmatpush2.msra.mxu0 0.0
    %345 = vmatprep.subr.mxu0 0.0
    %346 = vmatpush2.msra.mxu0 0.0
    %347 = vmatprep.subr.mxu0 0.0
    %348 = vmatpush2.msra.mxu0 0.0
    %349 = vmatprep.subr.mxu0 0.0
    %350 = vmatpush2.msra.mxu0 0.0
    %351 = vmatprep.subr.mxu0 0.0
    %352 = vmatpush2.msra.mxu0 0.0
    %353 = vmatprep.subr.mxu0 0.0
    %354 = vmatpush2.msra.mxu0 0.0
    %355 = vmatprep.subr.mxu0 0.0
    %356 = vmatpush2.msra.mxu0 0.0
    %357 = vmatprep.subr.mxu0 0.0
    %358 = vmatpush2.msra.mxu0 0.0
    %359 = vmatprep.mubr.f32.mxu0 0.0
    %360 = vmatmul.mubr.f32.gmra.mxu0 %v293
    %v361 = vpop.f32.mrf.mxu0
    %v362 = vadd.f32 0.0, %v361
    %v363 = vpop.f32.mrf.mxu0
    %364 = vdwg.mxu0
    %365 = vst.msk [vmem:[%s3] sm:$0xff] %vm216, %v289
    %366 = vst.msk [vmem:[%s3 + $0x8] sm:$0xff] %vm216, %v362
    // Predicated region
    $region18: #{tpu_custom_call.1} parent=1 // pred_check
      _
    $region19: #{tpu_custom_call.1} parent=1 // pred_check_branch
      %368 = sbr.rel (0) target = $region21
    $region20: #{tpu_custom_call.1} parent=1 // pred_region
      _
    $region21: #{tpu_custom_call.1} parent=1 // pred_fallthru
      _
    // Predicated region
    $region22: #{tpu_custom_call.1} parent=1 // pred_check
      _
    $region23: #{tpu_custom_call.1} parent=1 // pred_check_branch
      %370 = sbr.rel (0) target = $region25
    $region24: #{tpu_custom_call.1} parent=1 // pred_region
      _
    $region25: #{tpu_custom_call.1} parent=1 // pred_fallthru
      _
    %371 = vsyncpa [#allocation3], 1

</llo_original>
